<compile_context>
chip_gen: v5e
topology: v5e:2x2
jax: 0.10.0
libtpu: 0.0.40
codegen_flags: <defaults>
</compile_context>

<pallas_src>
import functools

import jax
import jax.numpy as jnp
from jax.experimental import pallas as pl
from jax.experimental.pallas import tpu as pltpu


def _round_up(x, m):
    return ((x + m - 1) // m) * m


def _mlp_fused_kernel(x_ref, p_ref, o_ref, *, layers, compute_dtype):
    """layers: static tuple of (w_row_off, d_in_pad, b_row_off, d_out_pad, activate)."""
    h = x_ref[...]                                   # [tb, d_in_pad0], compute dtype
    n = len(layers)
    for i, (w_off, d_in_p, b_off, d_out_p, act) in enumerate(layers):
        # Static, tile-aligned slices of the VMEM-resident parameter slab.
        w = p_ref[w_off:w_off + d_in_p, :d_out_p]    # [d_in_p, d_out_p], compute dtype
        b = p_ref[b_off:b_off + 1, :d_out_p].astype(jnp.float32)
        # MXU matmul with f32 accumulation; epilogue strictly f32 (v5e-safe).
        y = jnp.dot(h, w, preferred_element_type=jnp.float32) + b
        if act:
            y = jnp.where(y >= 0, y, 0.1 * y)        # LeakyReLU(negative_slope=0.1)
        h = y if i == n - 1 else y.astype(compute_dtype)
    o_ref[...] = h.astype(o_ref.dtype)               # lane-dense [tb, d_out_pad] store


def pack_mlp_params(params, *, compute_dtype=jnp.float32):
    """Pack [(w [d_in,d_out], b [d_out])] into one lane-dense, zero-padded slab.

    Returns (slab, meta, d_in_pad0, d_out_pad_last) where meta[i] =
    (w_row_off, d_in_pad, b_row_off, d_out_pad) with all offsets/extents
    sublane/lane aligned (8 rows f32 / 16 rows bf16, 128 cols).
    """
    row_align = 16 if compute_dtype == jnp.bfloat16 else 8
    d_out_pads = [_round_up(w.shape[1], 128) for (w, _) in params]
    d_in_pads = []
    for i, (w, _) in enumerate(params):
        if i == 0:
            d_in_pads.append(_round_up(w.shape[0], row_align))
        else:
            d_in_pads.append(d_out_pads[i - 1])      # chained padded widths
    slab_cols = max(d_out_pads)

    meta = []
    off = 0
    for i in range(len(params)):
        w_off = off
        off += d_in_pads[i]
        b_off = off
        off += row_align                             # bias lives in row 0 of this block
        meta.append((w_off, d_in_pads[i], b_off, d_out_pads[i]))
    total_rows = off

    slab = jnp.zeros((total_rows, slab_cols), compute_dtype)
    for (w, b), (w_off, _d_in_p, b_off, _d_out_p) in zip(params, meta):
        d_in, d_out = w.shape
        slab = slab.at[w_off:w_off + d_in, :d_out].set(w.astype(compute_dtype))
        slab = slab.at[b_off, :d_out].set(b.reshape(-1).astype(compute_dtype))
    return slab, tuple(meta), d_in_pads[0], d_out_pads[-1]


def mlp_forward(x, params, final_activation=False, block_batch=1024, use_bf16=False):
    """Fused MLP forward: all Linear(+bias)(+LeakyReLU) layers in ONE pallas_call.

    x: [B, Din] float32; params: list of (w [Din_i, Dout_i], b [Dout_i]) float32.
    """
    batch, d_in = x.shape
    n_layers = len(params)
    d_out = params[-1][0].shape[1]
    compute_dtype = jnp.bfloat16 if use_bf16 else jnp.float32
    sublane = 16 if use_bf16 else 8
    in_bytes = jnp.dtype(compute_dtype).itemsize

    slab, meta, d_in_pad0, d_out_pad_last = pack_mlp_params(
        params, compute_dtype=compute_dtype)
    activate = tuple((i != n_layers - 1) or final_activation for i in range(n_layers))
    layers = tuple(m + (a,) for m, a in zip(meta, activate))

    # --- batch tile selection -------------------------------------------------
    tb = min(block_batch, batch)
    tb = max(sublane, _round_up(tb, sublane))

    # VMEM-budget guard (16 MiB = smallest scoped-VMEM default, v5e; keeps us
    # well inside v7x's 64 MiB physical VMEM even if layer widths grow).
    param_bytes = slab.size * slab.dtype.itemsize
    def _vmem_est(tb_):
        return (2 * param_bytes                                  # double-buffered slab
                + 2 * tb_ * d_in_pad0 * in_bytes                 # x blocks
                + 2 * tb_ * d_out_pad_last * 4)                  # f32 out blocks
    budget = 16 * 1024 * 1024
    while _vmem_est(tb) > budget and tb > sublane:
        tb = max(sublane, _round_up(tb // 2, sublane))

    padded_batch = _round_up(batch, tb)
    steps = padded_batch // tb
    # v7x megacore: at large batch make sure the "parallel" axis has >= 2 steps
    # so both TensorCores stream tiles concurrently.
    if steps == 1 and batch >= 512 and tb >= 2 * sublane:
        tb = _round_up((tb + 1) // 2, sublane)
        padded_batch = _round_up(batch, tb)
        steps = padded_batch // tb
    grid = (steps,)

    # --- input padding / casting ---------------------------------------------
    xp = x.astype(compute_dtype)
    pad_rows = padded_batch - batch
    pad_cols = d_in_pad0 - d_in
    if pad_rows or pad_cols:
        xp = jnp.pad(xp, ((0, pad_rows), (0, pad_cols)))

    flops = sum(2 * padded_batch * dip * dop for (_, dip, _, dop, _) in layers)
    bytes_accessed = (xp.size * xp.dtype.itemsize
                      + param_bytes
                      + padded_batch * d_out_pad_last * 4)

    kernel = functools.partial(_mlp_fused_kernel, layers=layers,
                               compute_dtype=compute_dtype)
    out = pl.pallas_call(
        kernel,
        out_shape=jax.ShapeDtypeStruct((padded_batch, d_out_pad_last), jnp.float32),
        grid=grid,
        in_specs=[
            pl.BlockSpec((tb, d_in_pad0), lambda i: (i, 0)),
            # Constant block index -> parameter slab DMA'd once, VMEM-resident.
            pl.BlockSpec(slab.shape, lambda i: (0, 0)),
        ],
        out_specs=pl.BlockSpec((tb, d_out_pad_last), lambda i: (i, 0)),
        compiler_params=pltpu.CompilerParams(dimension_semantics=("parallel",)),
        cost_estimate=pl.CostEstimate(flops=flops, transcendentals=0,
                                      bytes_accessed=bytes_accessed),
    )(xp, slab)
    return out[:batch, :d_out]


def init_mlp_params(key, layers_size):
    """Deterministic init matching nn.Linear shapes (weights stored transposed)."""
    params = []
    for li in range(1, len(layers_size)):
        d_in, d_out = layers_size[li - 1], layers_size[li]
        key, kw, kb = jax.random.split(key, 3)
        bound = 1.0 / jnp.sqrt(d_in)                 # PyTorch default uniform bound
        w = jax.random.uniform(kw, (d_in, d_out), jnp.float32, -bound, bound)
        b = jax.random.uniform(kb, (d_out,), jnp.float32, -bound, bound)
        params.append((w, b))
    return params


def mlp_reference(x, params, final_activation=False):
    n_layers = len(params)
    for i, (w, b) in enumerate(params):
        y = x @ w + b
        if (i != n_layers - 1) or final_activation:
            y = jnp.where(y >= 0, y, 0.1 * y)
        x = y
    return x


if __name__ == "__main__":
    key = jax.random.PRNGKey(0)
    layers_size = [32, 64, 16]                       # MLP(layers_size=[32, 64, 16])
    batch = 8

    kx, kp = jax.random.split(key)
    x = jax.random.normal(kx, (batch, layers_size[0]), jnp.float32)
    params = init_mlp_params(kp, layers_size)

    # f32 path (exact vs reference).
    out = jax.block_until_ready(mlp_forward(x, params, final_activation=False))
    ref = mlp_reference(x, params, final_activation=False)
    assert out.shape == (batch, layers_size[-1])
    assert jnp.allclose(out, ref, atol=1e-5, rtol=1e-5)

    # Multi-step grid + batch padding path (forces 3 grid steps, 300 -> 384 rows).
    x2 = jax.random.normal(jax.random.PRNGKey(1), (300, layers_size[0]), jnp.float32)
    out2 = jax.block_until_ready(mlp_forward(x2, params, block_batch=128))
    ref2 = mlp_reference(x2, params)
    assert out2.shape == (300, layers_size[-1])
    assert jnp.allclose(out2, ref2, atol=1e-5, rtol=1e-5)

    # bf16-MXU fast path (v6e/v7x): f32 accumulate + f32 epilogue, looser tolerance.
    out_bf16 = jax.block_until_ready(mlp_forward(x, params, use_bf16=True))
    assert out_bf16.shape == (batch, layers_size[-1])
    assert jnp.allclose(out_bf16, ref, atol=1e-1, rtol=1e-1)

    print("KERNEL_OK")
</pallas_src>

<mosaic_0001>
module attributes {stable_mosaic.version = 11 : i64} {
  func.func @_mlp_fused_kernel(%arg0: i32, %arg1: memref<8x32xf32, #tpu.memory_space<vmem>>, %arg2: memref<176x128xf32, #tpu.memory_space<vmem>>, %arg3: memref<8x128xf32, #tpu.memory_space<vmem>>) attributes {dimension_semantics = [#tpu.dimension_semantics<parallel>], iteration_bounds = array<i64: 1>, scalar_prefetch = 0 : i64, scratch_operands = 0 : i64, tpu.core_type = #tpu.core_type<tc>, window_params = [{transform_indices = @transform_0, window_bounds = array<i64: 8, 32>}, {pipeline_mode = #tpu.pipeline_mode<synchronous>, transform_indices = @transform_1, window_bounds = array<i64: 176, 128>}, {transform_indices = @transform_2, window_bounds = array<i64: 8, 128>}]} {
    %c0 = arith.constant 0 : index
    %c0_0 = arith.constant 0 : index
    %0 = vector.load %arg1[%c0, %c0_0] : memref<8x32xf32, #tpu.memory_space<vmem>>, vector<8x32xf32>
    %c0_1 = arith.constant 0 : index
    %c0_2 = arith.constant 0 : index
    %1 = vector.load %arg2[%c0_1, %c0_2] : memref<176x128xf32, #tpu.memory_space<vmem>>, vector<32x128xf32>
    %c32 = arith.constant 32 : index
    %c0_3 = arith.constant 0 : index
    %2 = vector.load %arg2[%c32, %c0_3] : memref<176x128xf32, #tpu.memory_space<vmem>>, vector<1x128xf32>
    %cst = arith.constant dense<0.000000e+00> : vector<8x128xf32>
    %3 = tpu.matmul %0, %1, %cst {dimension_numbers = #tpu.dot_dimension_numbers<[1], [0], [0], [1], [0, 0, 1, 1], [], []>} : vector<8x32xf32>, vector<32x128xf32>, vector<8x128xf32> -> vector<8x128xf32>
    %4 = vector.broadcast %2 : vector<1x128xf32> to vector<8x128xf32>
    %5 = arith.addf %3, %4 : vector<8x128xf32>
    %cst_4 = arith.constant 0.000000e+00 : f32
    %6 = vector.broadcast %cst_4 : f32 to vector<8x128xf32>
    %7 = arith.cmpf oge, %5, %6 : vector<8x128xf32>
    %cst_5 = arith.constant 1.000000e-01 : f32
    %8 = vector.broadcast %cst_5 : f32 to vector<8x128xf32>
    %9 = arith.mulf %8, %5 : vector<8x128xf32>
    %10 = arith.select %7, %5, %9 : vector<8x128xi1>, vector<8x128xf32>
    %c40 = arith.constant 40 : index
    %c0_6 = arith.constant 0 : index
    %11 = vector.load %arg2[%c40, %c0_6] : memref<176x128xf32, #tpu.memory_space<vmem>>, vector<128x128xf32>
    %c168 = arith.constant 168 : index
    %c0_7 = arith.constant 0 : index
    %12 = vector.load %arg2[%c168, %c0_7] : memref<176x128xf32, #tpu.memory_space<vmem>>, vector<1x128xf32>
    %cst_8 = arith.constant dense<0.000000e+00> : vector<8x128xf32>
    %13 = tpu.matmul %10, %11, %cst_8 {dimension_numbers = #tpu.dot_dimension_numbers<[1], [0], [0], [1], [0, 0, 1, 1], [], []>} : vector<8x128xf32>, vector<128x128xf32>, vector<8x128xf32> -> vector<8x128xf32>
    %14 = vector.broadcast %12 : vector<1x128xf32> to vector<8x128xf32>
    %15 = arith.addf %13, %14 : vector<8x128xf32>
    %c0_9 = arith.constant 0 : index
    %c0_10 = arith.constant 0 : index
    %16 = vector.load %arg3[%c0_9, %c0_10] : memref<8x128xf32, #tpu.memory_space<vmem>>, vector<8x128xf32>
    tpu.vector_store %arg3[%c0_9, %c0_10], %15 {strides = array<i32>} : memref<8x128xf32, #tpu.memory_space<vmem>>, vector<8x128xf32>,
    return
  }
  func.func @transform_0(%arg0: i32) -> (i32, i32) {
    %c0_i32 = arith.constant 0 : i32
    %c0_i32_0 = arith.constant 0 : i32
    return %arg0, %c0_i32 : i32, i32
  }
  func.func @transform_1(%arg0: i32) -> (i32, i32) {
    %c0_i32 = arith.constant 0 : i32
    %c0_i32_0 = arith.constant 0 : i32
    %c0_i32_1 = arith.constant 0 : i32
    return %c0_i32, %c0_i32_0 : i32, i32
  }
  func.func @transform_2(%arg0: i32) -> (i32, i32) {
    %c0_i32 = arith.constant 0 : i32
    %c0_i32_0 = arith.constant 0 : i32
    return %arg0, %c0_i32 : i32, i32
  }
}

</mosaic_0001>

<llo_original>
// kernel: tpu_custom_call.1
$region0: #{tpu_custom_call.1}
  #allocation0 [shape = 'u32[]', space=smem, size = 0x4, offset = 0x4, fixed_abs, tag = 'smem constant byte address 0x4 - core index']
  #allocation1 [shape = 'u32[72,128]{1,0:T(1,128)}', space=vmem, size = 0x9000, scoped, tag = 'internal scratch']
  %s0 = inlined_call_operand.hbm [shape: f32[8,32], index: 0, kind: input, shape index: {}]
  %s1 = inlined_call_operand.hbm [shape: f32[176,128], index: 1, kind: input, shape index: {}]
  %s2 = inlined_call_operand.hbm [shape: f32[8,128], index: 2, kind: output, shape index: {}]
  %s3 = sld [smem:[#allocation0]]
  $region26: #{tpu_custom_call.1} parent=0
    _
  %s5 = ssub.s32 1, %s3
  %s6 = scalar_select 0, %s5, %s3
  $region1: #{tpu_custom_call.1} parent=0
    #allocation2 [shape = 'u8[4096]{0}', space=vmem, size = 0x1000, scoped, tag = 'input window, operand 0, single buffered']
    #allocation3 [shape = 's32[1]{0}', space=sflag, size = 0x4, scoped, tag = 'scoped memory for tpu_custom_call.1']
    #allocation4 [shape = 's32[1]{0}', space=sflag, size = 0x4, scoped, tag = 'scoped memory for tpu_custom_call.1']
    #allocation5 [shape = 'u8[90112]{0}', space=vmem, size = 0x16000, scoped, tag = 'input window, operand 1, single buffered']
    #allocation6 [shape = 's32[1]{0}', space=sflag, size = 0x4, scoped, tag = 'scoped memory for tpu_custom_call.1']
    #allocation7 [shape = 'u8[4096]{0}', space=vmem, size = 0x1000, scoped, tag = 'output window, operand 0, single buffered']
    %7 = vsyncpa [#allocation3], 0
    %8 = vsyncpa [#allocation6], 0
    %9 = vsyncpa [#allocation4], 0
    // Predicated region
    $region2: #{tpu_custom_call.1} parent=1 // pred_check
      _
    $region3: #{tpu_custom_call.1} parent=1 // pred_check_branch
      %11 = sbr.rel (0) target = $region5
    $region4: #{tpu_custom_call.1} parent=1 // pred_region
      %13 = vsyncadd [#allocation3], 0
      %s15 = sshll.u32 %s0, 4
      %s16 = int_to_ptr.hbm [resolvable:$true] %s15
      %s17 = sshll.u32 [#allocation2], 4
      %s18 = int_to_ptr.vmem [resolvable:$true] %s17
      %20 = dma.hbm_to_vmem [thread:$0]  %s16, 128, %s18, [#allocation3]
    $region5: #{tpu_custom_call.1} parent=1 // pred_fallthru
      _
    // Predicated region
    $region6: #{tpu_custom_call.1} parent=1 // pred_check
      _
    $region7: #{tpu_custom_call.1} parent=1 // pred_check_branch
      %22 = sbr.rel (0) target = $region9
    $region8: #{tpu_custom_call.1} parent=1 // pred_region
      %24 = vsyncadd [#allocation6], 0
      %s25 = sshll.u32 %s1, 4
      %s26 = int_to_ptr.hbm [resolvable:$true] %s25
      %s27 = sshll.u32 [#allocation5], 4
      %s28 = int_to_ptr.vmem [resolvable:$true] %s27
      %33 = dma.hbm_to_vmem [thread:$0]  %s26, 2816, %s28, [#allocation6], 128, 128, 8
    $region9: #{tpu_custom_call.1} parent=1 // pred_fallthru
      _
    // Predicated region
    $region10: #{tpu_custom_call.1} parent=1 // pred_check
      _
    $region11: #{tpu_custom_call.1} parent=1 // pred_check_branch
      %35 = sbr.rel (0) target = $region13
    $region12: #{tpu_custom_call.1} parent=1 // pred_region
      %37 = dma.done [#allocation3], 128
    $region13: #{tpu_custom_call.1} parent=1 // pred_fallthru
      _
    // Predicated region
    $region14: #{tpu_custom_call.1} parent=1 // pred_check
      _
    $region15: #{tpu_custom_call.1} parent=1 // pred_check_branch
      %39 = sbr.rel (0) target = $region17
    $region16: #{tpu_custom_call.1} parent=1 // pred_region
      %41 = dma.done [#allocation6], 2816
    $region17: #{tpu_custom_call.1} parent=1 // pred_fallthru
      _
    %v42 = vld [vmem:[#allocation2] sm:$0xff]
    %v43 = vld [vmem:[#allocation5] sm:$0xff]
    %v44 = vld [vmem:[#allocation5 + $0x8] sm:$0xff]
    %v45 = vld [vmem:[#allocation5 + $0x10] sm:$0xff]
    %v46 = vld [vmem:[#allocation5 + $0x18] sm:$0xff]
    %v47 = vld [vmem:[#allocation5 + $0x20] sm:$0x1]
    %v48 = vperm.slane %v47, 0
    %vm49 = vcmask 261120
    %v51 = vsel %vm49, %v42, 0
    %53 = vmatpush.msra.mxu0 0.0
    %54 = vmatpush.msra.mxu0 0.0
    %55 = vmatpush.msra.mxu0 0.0
    %56 = vmatpush.msra.mxu0 0.0
    %57 = vmatpush.msra.mxu0 0.0
    %58 = vmatpush.msra.mxu0 0.0
    %59 = vmatpush.msra.mxu0 0.0
    %60 = vmatpush.msra.mxu0 0.0
    %61 = vmatpush.msra.mxu0 0.0
    %62 = vmatpush.msra.mxu0 0.0
    %63 = vmatpush.msra.mxu0 0.0
    %64 = vmatpush.msra.mxu0 0.0
    %65 = vmatpush.msra.mxu0 %v46
    %66 = vmatpush.msra.mxu0 %v45
    %67 = vmatpush.msra.mxu0 %v44
    %68 = vmatpush.msra.mxu0 %v43
    %69 = vmatmul.f32.gmra.mxu0 %v51
    %v70 = vpop.f32.mrf.mxu0
    %v71 = vadd.f32 %v48, %v70
    %72 = vdwg.mxu0
    %vm73 = vcmp.ge.f32.partialorder %v71, 0.0
    %v74 = vmul.f32 %v71, 0.1
    %v75 = vsel %vm73, %v71, %v74
    %v76 = vld [vmem:[#allocation5 + $0x28] sm:$0xff]
    %v77 = vld [vmem:[#allocation5 + $0x30] sm:$0xff]
    %v78 = vld [vmem:[#allocation5 + $0x38] sm:$0xff]
    %v79 = vld [vmem:[#allocation5 + $0x40] sm:$0xff]
    %v80 = vld [vmem:[#allocation5 + $0x48] sm:$0xff]
    %v81 = vld [vmem:[#allocation5 + $0x50] sm:$0xff]
    %v82 = vld [vmem:[#allocation5 + $0x58] sm:$0xff]
    %v83 = vld [vmem:[#allocation5 + $0x60] sm:$0xff]
    %v84 = vld [vmem:[#allocation5 + $0x68] sm:$0xff]
    %v85 = vld [vmem:[#allocation5 + $0x70] sm:$0xff]
    %v86 = vld [vmem:[#allocation5 + $0x78] sm:$0xff]
    %v87 = vld [vmem:[#allocation5 + $0x80] sm:$0xff]
    %v88 = vld [vmem:[#allocation5 + $0x88] sm:$0xff]
    %v89 = vld [vmem:[#allocation5 + $0x90] sm:$0xff]
    %v90 = vld [vmem:[#allocation5 + $0x98] sm:$0xff]
    %v91 = vld [vmem:[#allocation5 + $0xa0] sm:$0xff]
    %v92 = vld [vmem:[#allocation5 + $0xa8] sm:$0x1]
    %v93 = vperm.slane %v92, 0
    %94 = vmatpush.msra.mxu0 %v91
    %95 = vmatpush.msra.mxu0 %v90
    %96 = vmatpush.msra.mxu0 %v89
    %97 = vmatpush.msra.mxu0 %v88
    %98 = vmatpush.msra.mxu0 %v87
    %99 = vmatpush.msra.mxu0 %v86
    %100 = vmatpush.msra.mxu0 %v85
    %101 = vmatpush.msra.mxu0 %v84
    %102 = vmatpush.msra.mxu0 %v83
    %103 = vmatpush.msra.mxu0 %v82
    %104 = vmatpush.msra.mxu0 %v81
    %105 = vmatpush.msra.mxu0 %v80
    %106 = vmatpush.msra.mxu0 %v79
    %107 = vmatpush.msra.mxu0 %v78
    %108 = vmatpush.msra.mxu0 %v77
    %109 = vmatpush.msra.mxu0 %v76
    %110 = vmatmul.f32.gmra.mxu0 %v75
    %v111 = vpop.f32.mrf.mxu0
    %v112 = vadd.f32 %v93, %v111
    %113 = vdwg.mxu0
    %114 = vst [vmem:[#allocation7] sm:$0xff] %v112
    // Predicated region
    $region18: #{tpu_custom_call.1} parent=1 // pred_check
      _
    $region19: #{tpu_custom_call.1} parent=1 // pred_check_branch
      %116 = sbr.rel (0) target = $region21
    $region20: #{tpu_custom_call.1} parent=1 // pred_region
      %118 = vsyncadd [#allocation4], 0
      %s120 = sshll.u32 [#allocation7], 4
      %s121 = int_to_ptr.vmem [resolvable:$true] %s120
      %s122 = sshll.u32 %s2, 4
      %s123 = int_to_ptr.hbm [resolvable:$true] %s122
      %125 = dma.vmem_to_hbm [thread:$0]  %s121, 128, %s123, [#allocation4]
    $region21: #{tpu_custom_call.1} parent=1 // pred_fallthru
      _
    // Predicated region
    $region22: #{tpu_custom_call.1} parent=1 // pred_check
      _
    $region23: #{tpu_custom_call.1} parent=1 // pred_check_branch
      %127 = sbr.rel (0) target = $region25
    $region24: #{tpu_custom_call.1} parent=1 // pred_region
      %129 = dma.done [#allocation4], 128
    $region25: #{tpu_custom_call.1} parent=1 // pred_fallthru
      _
    %130 = vsyncpa [#allocation3], 1
    %131 = vsyncpa [#allocation6], 1
    %132 = vsyncpa [#allocation4], 1

</llo_original>
